<compile_context>
chip_gen: v7x
topology: tpu7x:2x2x1
jax: 0.10.0
libtpu: 0.0.40
codegen_flags: <defaults>
</compile_context>

<pallas_src>
import numpy as np
import jax
import jax.numpy as jnp
from jax import lax
from jax.experimental import pallas as pl
from jax.experimental.pallas import tpu as pltpu


_ROW_TILE = 256                 # row tile for the one-time max / normalize passes
_DEPTH_CHUNK_BYTES = 4 << 20    # per-buffer VMEM budget for the extraction kernel


# ---------------------------------------------------------------------------
# Kernel 1 (one-time, __init__): tiled global max over a (rows, W) 2-D view.
# Output block index is constant across the grid -> resident accumulator (P3).
# ---------------------------------------------------------------------------
def _make_global_max_kernel(rows: int, tile: int):
    needs_mask = (rows % tile) != 0

    def kernel(x_ref, o_ref):
        i = pl.program_id(0)

        @pl.when(i == 0)
        def _():
            o_ref[...] = jnp.full_like(o_ref, -jnp.inf)

        x = x_ref[...]
        if needs_mask:  # static: only emitted when the last row tile is partial
            row = i * tile + lax.broadcasted_iota(jnp.int32, x.shape, 0)
            x = jnp.where(row < rows, x, -jnp.inf)
        o_ref[...] = jnp.maximum(o_ref[...], jnp.max(x, keepdims=True))

    return kernel


def _global_max(x2d: jax.Array) -> jax.Array:
    rows, w = x2d.shape
    tile = rows if rows <= _ROW_TILE else _ROW_TILE
    return pl.pallas_call(
        _make_global_max_kernel(rows, tile),
        out_shape=jax.ShapeDtypeStruct((1, 1), jnp.float32),
        grid_spec=pltpu.PrefetchScalarGridSpec(
            num_scalar_prefetch=0,
            grid=(pl.cdiv(rows, tile),),
            in_specs=[pl.BlockSpec((tile, w), lambda i: (i, 0))],
            out_specs=pl.BlockSpec((1, 1), lambda i: (0, 0)),
        ),
        compiler_params=pltpu.CompilerParams(
            dimension_semantics=("arbitrary",)),
    )(x2d)


# ---------------------------------------------------------------------------
# Kernel 2 (one-time, __init__): pre-normalize the whole stack by 1/max.
# Scalar-broadcast multiply (the exact f32 reciprocal is computed once outside).
# ---------------------------------------------------------------------------
def _scale_kernel(inv_ref, x_ref, o_ref):
    o_ref[...] = x_ref[...] * inv_ref[0, 0]


def _normalize(x2d: jax.Array, inv_max: jax.Array) -> jax.Array:
    rows, w = x2d.shape
    tile = rows if rows <= _ROW_TILE else _ROW_TILE
    return pl.pallas_call(
        _scale_kernel,
        out_shape=jax.ShapeDtypeStruct((rows, w), jnp.float32),
        grid_spec=pltpu.PrefetchScalarGridSpec(
            num_scalar_prefetch=0,
            grid=(pl.cdiv(rows, tile),),
            in_specs=[
                pl.BlockSpec(memory_space=pltpu.MemorySpace.SMEM),  # (1,1) 1/max
                pl.BlockSpec((tile, w), lambda i: (i, 0)),
            ],
            out_specs=pl.BlockSpec((tile, w), lambda i: (i, 0)),
        ),
        compiler_params=pltpu.CompilerParams(
            dimension_semantics=("parallel",)),
    )(inv_max, x2d)


# ---------------------------------------------------------------------------
# Kernel 3 (per forward call): batched dynamic window gather from the
# pre-normalized stack.
#   idx_ref   : scalar-prefetch SMEM int32[N, 2] = (row_start, col_start), elements
#   stack_hbm : pre-normalized stack, (D, H, W) f32, left in HBM (memory_space=pl.ANY)
#   o_ref     : VMEM output block (depth_chunk, LV, LV)  (batch dim squeezed)
#   buf, sem  : manual double buffer for the HBM->VMEM window DMA (P4)
# ---------------------------------------------------------------------------
def _make_extract_kernel(lv: int, dc: int, step_align: int):
    def kernel(idx_ref, stack_hbm, o_ref, buf, sem):
        n = pl.program_id(0)            # block index within the batch
        c = pl.program_id(1)            # depth-chunk index
        n_dc = pl.num_programs(1)
        step = n * n_dc + c
        total = pl.num_programs(0) * n_dc

        def window_copy(blk, dchunk, slot):
            rs = pl.multiple_of(idx_ref[blk, 0], step_align)
            cs = pl.multiple_of(idx_ref[blk, 1], step_align)
            d0 = pl.multiple_of(dchunk * dc, dc)
            return pltpu.make_async_copy(
                stack_hbm.at[pl.ds(d0, dc), pl.ds(rs, lv), pl.ds(cs, lv)],
                buf.at[slot],
                sem.at[slot],
            )

        slot = step % 2

        @pl.when(step == 0)
        def _():                        # prime the pipeline
            window_copy(n, c, slot).start()

        window_copy(n, c, slot).wait()  # current window is now in VMEM

        @pl.when(step + 1 < total)
        def _():                        # prefetch next window into the other slot
            nxt = step + 1
            window_copy(nxt // n_dc, nxt % n_dc, 1 - slot).start()

        o_ref[...] = buf[slot]          # pipeline DMAs this back to HBM

    return kernel


def _pick_depth_chunk(d: int, lv: int) -> int:
    """Largest divisor of d whose (chunk, lv, lv) f32 block fits the VMEM budget."""
    best = 1
    for c in range(1, d + 1):
        if d % c == 0 and c * lv * lv * 4 <= _DEPTH_CHUNK_BYTES:
            best = c
    return best


def _build_extractor(d: int, lv: int, dc: int, step_align: int, n_blocks: int):
    n_dc = d // dc
    return pl.pallas_call(
        _make_extract_kernel(lv, dc, step_align),
        out_shape=jax.ShapeDtypeStruct((n_blocks, d, lv, lv), jnp.float32),
        grid_spec=pltpu.PrefetchScalarGridSpec(
            num_scalar_prefetch=1,
            grid=(n_blocks, n_dc),
            in_specs=[pl.BlockSpec(memory_space=pl.ANY)],        # stack stays in HBM
            out_specs=pl.BlockSpec((None, dc, lv, lv),
                                   lambda n, c, idx: (n, c, 0, 0)),
            scratch_shapes=[
                pltpu.VMEM((2, dc, lv, lv), jnp.float32),
                pltpu.SemaphoreType.DMA((2,)),
            ],
        ),
        # "arbitrary": the manual double buffer carries state across grid steps.
        compiler_params=pltpu.CompilerParams(
            dimension_semantics=("arbitrary", "arbitrary")),
    )


class BlockSchedulerPallas:
    """JAX/Pallas port of Block_Scheduler (forward path)."""

    TOP_EDGE = 1
    BOTTOM_EDGE = 2
    LEFT_EDGE = 4
    RIGHT_EDGE = 8

    def __init__(self, whole_stack, axial_view: int, lateral_view: int,
                 lateral_overlap: int, mask_mode: str = "smooth"):
        whole_stack = np.asarray(whole_stack)
        d, h, w = whole_stack.shape
        self.mask_mode = mask_mode
        self.axial_view = d if axial_view > d else axial_view
        self.lateral_view = h if lateral_view > h else lateral_view
        self.lateral_overlap = lateral_overlap
        self.step_size = self.lateral_view - self.lateral_overlap
        self.width_block_num = (w - self.lateral_view) // self.step_size + 1
        self.height_block_num = (h - self.lateral_view) // self.step_size + 1
        self._d, self._h, self._w = d, h, w

        # ---- one-time normalization (hoisted out of forward) ----
        stack_f32 = jnp.asarray(whole_stack, jnp.float32)         # (D, H, W)
        x2d = stack_f32.reshape(d * h, w)
        maxv = _global_max(x2d)                                    # (1, 1) f32
        inv_max = (jnp.float32(1.0) / maxv).astype(jnp.float32)    # exact reciprocal
        self._stack = _normalize(x2d, inv_max).reshape(d, h, w)    # pre-normalized, HBM
        self._stack = jax.block_until_ready(self._stack)

        # ---- extraction kernel configuration ----
        self._dc = _pick_depth_chunk(d, self.lateral_view)
        self._step_align = max(int(self.step_size), 1)
        self._extractors = {}   # jitted extractors cached per batch size

        # TODO(synk): rec_stack bookkeeping (get_single_mask / get_global_mask /
        # feedback_recovered_block) is host-side numpy mutable state outside forward();
        # not ported to Pallas.

    # -- batched extraction: (N, 2) array of (row_index, col_index) block indices --
    def forward_batch(self, row_col_indices):
        idx = np.asarray(row_col_indices, np.int32).reshape(-1, 2)
        n_blocks = idx.shape[0]
        if n_blocks not in self._extractors:
            self._extractors[n_blocks] = jax.jit(
                _build_extractor(self._d, self.lateral_view, self._dc,
                                 self._step_align, n_blocks))
        starts = jnp.asarray(idx * self.step_size, jnp.int32)     # element offsets
        return self._extractors[n_blocks](starts, self._stack)    # (N, D, LV, LV)

    # -- reference API: one block.  Like the PyTorch forward, it returns ALL D
    #    depth slices (the reference never slices along depth with axial_view). --
    def forward(self, row_index: int, col_index: int):
        return self.forward_batch([[row_index, col_index]])[0]


if __name__ == "__main__":
    key = jax.random.PRNGKey(0)
    D, H, W = 4, 16, 16
    whole_stack = np.asarray(
        jax.random.uniform(key, (D, H, W), jnp.float32, minval=0.0, maxval=10.0))

    sched = BlockSchedulerPallas(
        whole_stack, axial_view=4, lateral_view=8, lateral_overlap=4)

    # pure-numpy reference
    ref_stack = whole_stack.astype(np.float32) / whole_stack.max()

    # single-block forward (reference API)
    row_index, col_index = 1, 2
    block = jax.block_until_ready(sched.forward(row_index, col_index))
    r0 = row_index * sched.step_size
    c0 = col_index * sched.step_size
    ref_block = ref_stack[:, r0:r0 + sched.lateral_view, c0:c0 + sched.lateral_view]
    np.testing.assert_allclose(np.asarray(block), ref_block, rtol=1e-6, atol=1e-6)
    assert block.shape == (D, sched.lateral_view, sched.lateral_view)

    # batched forward over every block in the schedule (one pallas_call, grid=(9,1))
    all_idx = [[r, c] for r in range(sched.height_block_num)
               for c in range(sched.width_block_num)]
    blocks = jax.block_until_ready(sched.forward_batch(all_idx))
    for (r, c), blk in zip(all_idx, np.asarray(blocks)):
        rr, cc = r * sched.step_size, c * sched.step_size
        np.testing.assert_allclose(
            blk, ref_stack[:, rr:rr + sched.lateral_view, cc:cc + sched.lateral_view],
            rtol=1e-6, atol=1e-6)

    print("KERNEL_OK")
</pallas_src>

<mosaic_0001>
module attributes {stable_mosaic.version = 11 : i64} {
  func.func @kernel(%arg0: i32, %arg1: memref<64x16xf32, #tpu.memory_space<vmem>>, %arg2: memref<1x1xf32, #tpu.memory_space<vmem>>) attributes {dimension_semantics = [#tpu.dimension_semantics<arbitrary>], iteration_bounds = array<i64: 1>, scalar_prefetch = 0 : i64, scratch_operands = 0 : i64, tpu.core_type = #tpu.core_type<tc>, window_params = [{transform_indices = @transform_0, window_bounds = array<i64: 64, 16>}, {pipeline_mode = #tpu.pipeline_mode<synchronous>, transform_indices = @transform_1, window_bounds = array<i64: 1, 1>}]} {
    %c0_i32 = arith.constant 0 : i32
    %0 = arith.cmpi eq, %arg0, %c0_i32 : i32
    %1 = arith.extui %0 : i1 to i32
    %c0_i32_0 = arith.constant 0 : i32
    %2 = arith.cmpi ne, %1, %c0_i32_0 : i32
    scf.if %2 {
      %cst_6 = arith.constant 0xFF800000 : f32
      %12 = vector.broadcast %cst_6 : f32 to vector<1x1xf32>
      %c0_7 = arith.constant 0 : index
      %c0_8 = arith.constant 0 : index
      %13 = vector.load %arg2[%c0_7, %c0_8] : memref<1x1xf32, #tpu.memory_space<vmem>>, vector<1x1xf32>
      tpu.vector_store %arg2[%c0_7, %c0_8], %12 {strides = array<i32>} : memref<1x1xf32, #tpu.memory_space<vmem>>, vector<1x1xf32>,
    } else {
    }
    %c0 = arith.constant 0 : index
    %c0_1 = arith.constant 0 : index
    %3 = vector.load %arg1[%c0, %c0_1] : memref<64x16xf32, #tpu.memory_space<vmem>>, vector<64x16xf32>
    %c0_2 = arith.constant 0 : index
    %c0_3 = arith.constant 0 : index
    %4 = vector.load %arg2[%c0_2, %c0_3] : memref<1x1xf32, #tpu.memory_space<vmem>>, vector<1x1xf32>
    %5 = vector.shape_cast %3 : vector<64x16xf32> to vector<1x64x16xf32>
    %cst = arith.constant dense<0xFF800000> : vector<1xf32>
    %6 = vector.multi_reduction <maximumf>, %5, %cst [1, 2] : vector<1x64x16xf32> to vector<1xf32>
    %7 = vector.shape_cast %6 : vector<1xf32> to vector<1x1x1xf32>
    %8 = vector.extract %7[0, 0, 0] : f32 from vector<1x1x1xf32>
    %9 = vector.broadcast %8 : f32 to vector<1x1xf32>
    %10 = arith.maximumf %4, %9 : vector<1x1xf32>
    %c0_4 = arith.constant 0 : index
    %c0_5 = arith.constant 0 : index
    %11 = vector.load %arg2[%c0_4, %c0_5] : memref<1x1xf32, #tpu.memory_space<vmem>>, vector<1x1xf32>
    tpu.vector_store %arg2[%c0_4, %c0_5], %10 {strides = array<i32>} : memref<1x1xf32, #tpu.memory_space<vmem>>, vector<1x1xf32>,
    return
  }
  func.func @transform_0(%arg0: i32) -> (i32, i32) {
    %c0_i32 = arith.constant 0 : i32
    %c0_i32_0 = arith.constant 0 : i32
    return %arg0, %c0_i32 : i32, i32
  }
  func.func @transform_1(%arg0: i32) -> (i32, i32) {
    %c0_i32 = arith.constant 0 : i32
    %c0_i32_0 = arith.constant 0 : i32
    %c0_i32_1 = arith.constant 0 : i32
    return %c0_i32, %c0_i32_0 : i32, i32
  }
}

</mosaic_0001>

<llo_original>
// kernel: tpu_custom_call.1
$region0: #{tpu_custom_call.1}
  #allocation0 [shape = 'u32[]', space=smem, size = 0x4, offset = 0x4, fixed_abs, tag = 'smem constant byte address 0x4 - core index']
  #allocation1 [shape = 'u32[144,128]{1,0:T(1,128)}', space=vmem, size = 0x12000, scoped, tag = 'internal scratch']
  %s0 = inlined_call_operand.vmem [shape: f32[64,16], index: 0, kind: input, shape index: {}]
  %s1 = inlined_call_operand.hbm [shape: f32[1,1], index: 1, kind: output, shape index: {}]
  %s2 = sld [smem:[#allocation0]]
  $region18: #{tpu_custom_call.1} parent=0
    _
  %s4 = ssub.s32 1, %s2
  %s5 = scalar_select 0, %s4, %s2
  $region1: #{tpu_custom_call.1} parent=0
    #allocation2 [shape = 'u8[512]{0}', space=vmem, size = 0x400, scoped, tag = 'output window, operand 0, single buffered']
    #allocation3 [shape = 's32[1]{0}', space=sflag, size = 0x4, scoped, tag = 'scoped memory for tpu_custom_call.1']
    %6 = vsyncpa [#allocation3], 0
    // Predicated region
    $region2: #{tpu_custom_call.1} parent=1 // pred_check
      _
    $region3: #{tpu_custom_call.1} parent=1 // pred_check_branch
      %8 = sbr.rel (0) target = $region5
    $region4: #{tpu_custom_call.1} parent=1 // pred_region
      _
    $region5: #{tpu_custom_call.1} parent=1 // pred_fallthru
      _
    %p9 = scmp.eq.s32.totalorder 0, 0
    // Predicated region
    $region6: #{tpu_custom_call.1} parent=1 // pred_check
      %p10 = pneg %p9
    $region7: #{tpu_custom_call.1} parent=1 // pred_check_branch
      %12 = sbr.rel (%p10) target = $region9
    $region8: #{tpu_custom_call.1} parent=1 // pred_region
      %vm13 = vcmask 0
      %14 = vst.msk [vmem:[#allocation2] sm:$0x1] %vm13, -inf
    $region9: #{tpu_custom_call.1} parent=1 // pred_fallthru
      _
    %v15 = vld [vmem:[%s0] sm:$0xff]
    %v16 = vld [vmem:[%s0 + $0x8] sm:$0xff]
    %v17 = vld [vmem:[%s0 + $0x10] sm:$0xff]
    %v18 = vld [vmem:[%s0 + $0x18] sm:$0xff]
    %v19 = vld [vmem:[%s0 + $0x20] sm:$0xff]
    %v20 = vld [vmem:[%s0 + $0x28] sm:$0xff]
    %v21 = vld [vmem:[%s0 + $0x30] sm:$0xff]
    %v22 = vld [vmem:[%s0 + $0x38] sm:$0xff]
    %v23 = vld [vmem:[#allocation2] sm:$0x1]
    %vm24 = vcmask 130048
    %v25 = vsel %vm24, %v15, -inf
    %v26 = vsel %vm24, %v16, -inf
    %v27 = vsel %vm24, %v17, -inf
    %v28 = vsel %vm24, %v18, -inf
    %v29 = vsel %vm24, %v19, -inf
    %v30 = vmax.f32 %v25, %v29
    %v31 = vsel %vm24, %v20, -inf
    %v32 = vmax.f32 %v26, %v31
    %v33 = vsel %vm24, %v21, -inf
    %v34 = vmax.f32 %v27, %v33
    %v35 = vsel %vm24, %v22, -inf
    %v36 = vmax.f32 %v28, %v35
    %v37 = vmax.f32 %v30, %v32
    %v38 = vmax.f32 %v34, %v36
    %v39 = vmax.f32 %v37, %v38
    %40 = vmax.xlane.f32.xlu0 %v39
    %v41 = vpop.xlane.xlu0 %40
    %v42 = vrot.slane %v41, 4
    %v43 = vmax.f32 %v41, %v42
    %v44 = vrot.slane %v43, 2
    %v45 = vmax.f32 %v43, %v44
    %v46 = vrot.slane %v45, 1
    %v47 = vmax.f32 %v45, %v46
    %s48 = vtos %v47
    %v49 = vstv %s48
    %v50 = vmax.f32 %v23, %v49
    %vm51 = vcmask 0
    %52 = vst.msk [vmem:[#allocation2] sm:$0x1] %vm51, %v50
    // Predicated region
    $region10: #{tpu_custom_call.1} parent=1 // pred_check
      _
    $region11: #{tpu_custom_call.1} parent=1 // pred_check_branch
      %54 = sbr.rel (0) target = $region13
    $region12: #{tpu_custom_call.1} parent=1 // pred_region
      %s56 = ssub.s32 16, 16
      %57 = vsyncadd [#allocation3], %s56
      %s59 = sshll.u32 [#allocation2], 4
      %s60 = int_to_ptr.vmem [resolvable:$true] %s59
      %62 = dma.vmem_to_hbm [thread:$0]  %s60, 16, %s1, [#allocation3]
    $region13: #{tpu_custom_call.1} parent=1 // pred_fallthru
      _
    // Predicated region
    $region14: #{tpu_custom_call.1} parent=1 // pred_check
      _
    $region15: #{tpu_custom_call.1} parent=1 // pred_check_branch
      %64 = sbr.rel (0) target = $region17
    $region16: #{tpu_custom_call.1} parent=1 // pred_region
      %65 = dma.done [#allocation3], 16
    $region17: #{tpu_custom_call.1} parent=1 // pred_fallthru
      _
    %66 = vsyncpa [#allocation3], 1

</llo_original>
